<compile_context>
chip_gen: v6e
topology: v6e:2x2x1
jax: 0.10.0
libtpu: 0.0.40
codegen_flags: <defaults>
</compile_context>

<pallas_src>
import functools

import jax
import jax.numpy as jnp
from jax.experimental import pallas as pl
from jax.experimental.pallas import tpu as pltpu


# ------------------------------ helpers -------------------------------------

def _round_up(x, m):
    return ((x + m - 1) // m) * m


def _pick_tk(Kp):
    """Kp is a multiple of 128; pick a K tile <= 2048 that divides Kp."""
    if Kp <= 2048:
        return Kp
    for cand in (2048, 1792, 1536, 1280, 1024, 768, 512, 384, 256, 128):
        if Kp % cand == 0:
            return cand
    return 128


def _bn_row_tile(M, C):
    """Row tile (~1 MiB of f32) for the batch-norm kernels, multiple of 8."""
    t = (1 << 20) // (4 * C)
    t = max(8, min(1024, (t // 8) * 8))
    return min(t, _round_up(M, 8))


# --------------------------- Pallas kernels ---------------------------------

def _matmul_kernel(a_ref, b_ref, o_ref, acc_ref):
    @pl.when(pl.program_id(2) == 0)
    def _():
        acc_ref[...] = jnp.zeros_like(acc_ref)
    acc_ref[...] += jnp.dot(a_ref[...], b_ref[...],
                            preferred_element_type=jnp.float32)

    @pl.when(pl.program_id(2) == pl.num_programs(2) - 1)
    def _():
        o_ref[...] = acc_ref[...].astype(o_ref.dtype)


def _bn_stats_kernel(x_ref, sum_ref, sq_ref):
    @pl.when(pl.program_id(0) == 0)
    def _():
        sum_ref[...] = jnp.zeros_like(sum_ref)
        sq_ref[...] = jnp.zeros_like(sq_ref)
    x = x_ref[...]
    sum_ref[...] += jnp.sum(x, axis=0, keepdims=True)
    sq_ref[...] += jnp.sum(x * x, axis=0, keepdims=True)


def _bn_norm_kernel(x_ref, sum_ref, sq_ref, g_ref, b_ref, o_ref,
                    *, eps, relu, count, l2norm):
    inv = 1.0 / count
    mean = sum_ref[...] * inv
    var = jnp.maximum(sq_ref[...] * inv - mean * mean, 0.0)
    y = (x_ref[...] - mean) * (jax.lax.rsqrt(var + eps) * g_ref[...]) + b_ref[...]
    if relu:
        y = jnp.maximum(y, 0.0)
    if l2norm:
        nrm = jnp.sqrt(jnp.sum(y * y, axis=-1, keepdims=True))
        y = y / jnp.maximum(nrm, 1e-12)
    o_ref[...] = y


def _bn_norm_add_relu_kernel(x_ref, r_ref, sum_ref, sq_ref, g_ref, b_ref, o_ref,
                             *, eps, count):
    inv = 1.0 / count
    mean = sum_ref[...] * inv
    var = jnp.maximum(sq_ref[...] * inv - mean * mean, 0.0)
    y = (x_ref[...] - mean) * (jax.lax.rsqrt(var + eps) * g_ref[...]) + b_ref[...]
    o_ref[...] = jnp.maximum(y + r_ref[...], 0.0)


def _max9_kernel(*refs):
    o_ref = refs[-1]
    m = refs[0][...]
    for r in refs[1:-1]:
        m = jnp.maximum(m, r[...])
    o_ref[...] = m


def _gap_kernel(x_ref, o_ref):
    o_ref[...] = jnp.mean(x_ref[...], axis=1, keepdims=True)


# ------------------------- Pallas call wrappers ------------------------------

def pallas_matmul(a, wd):
    """a: (M, K) f32 activations; wd['w']: (Kp, Np) bf16 pre-padded weights.
    Returns (M, wd['cout']) f32 with f32 accumulation on the MXU."""
    M, K = a.shape
    Kp, Np = wd['w'].shape
    n_true = wd['cout']
    assert K <= Kp

    tm = 256 if M >= 256 else _round_up(M, 8)
    tn = 256 if (Np >= 256 and Np % 256 == 0) else 128
    tk = _pick_tk(Kp)
    Mp = _round_up(M, tm)
    # v7x megacore: make sure at least one parallel axis has >= 2 blocks.
    if Mp // tm == 1 and Np // tn == 1 and tm >= 16:
        tm = max(8, _round_up(tm // 2, 8))
        Mp = _round_up(M, tm)

    a_p = jnp.pad(a.astype(jnp.bfloat16), ((0, Mp - M), (0, Kp - K)))

    gm, gn, gk = Mp // tm, Np // tn, Kp // tk
    cost = pl.CostEstimate(
        flops=2 * Mp * Np * Kp,
        transcendentals=0,
        bytes_accessed=Mp * Kp * 2 + Kp * Np * 2 + Mp * Np * 4)

    out = pl.pallas_call(
        _matmul_kernel,
        out_shape=jax.ShapeDtypeStruct((Mp, Np), jnp.float32),
        grid_spec=pltpu.PrefetchScalarGridSpec(
            num_scalar_prefetch=0,
            grid=(gm, gn, gk),
            in_specs=[pl.BlockSpec((tm, tk), lambda i, j, k: (i, k)),
                      pl.BlockSpec((tk, tn), lambda i, j, k: (k, j))],
            out_specs=pl.BlockSpec((tm, tn), lambda i, j, k: (i, j)),
            scratch_shapes=[pltpu.VMEM((tm, tn), jnp.float32)]),
        compiler_params=pltpu.CompilerParams(
            dimension_semantics=("parallel", "parallel", "arbitrary"),
            vmem_limit_bytes=32 * 1024 * 1024),
        cost_estimate=cost,
    )(a_p, wd['w'])
    return out[:M, :n_true]


def batchnorm(x2d, gamma, beta, *, relu=False, residual=None, l2norm=False,
              eps=1e-5):
    """Training-mode batch norm over rows of (M, C); two-pass tiled Pallas.
    Optionally fuses ReLU, residual-add+ReLU, or final L2 normalization."""
    M, C = x2d.shape
    tm = _bn_row_tile(M, C)
    Mp = _round_up(M, tm)
    xp = jnp.pad(x2d, ((0, Mp - M), (0, 0))) if Mp != M else x2d

    grid = (Mp // tm,)
    row_spec = pl.BlockSpec((tm, C), lambda i: (i, 0))
    vec_spec = pl.BlockSpec((1, C), lambda i: (0, 0))

    sums, sqs = pl.pallas_call(
        _bn_stats_kernel,
        out_shape=(jax.ShapeDtypeStruct((1, C), jnp.float32),
                   jax.ShapeDtypeStruct((1, C), jnp.float32)),
        grid_spec=pltpu.PrefetchScalarGridSpec(
            num_scalar_prefetch=0, grid=grid,
            in_specs=[row_spec],
            out_specs=[vec_spec, vec_spec]),
        compiler_params=pltpu.CompilerParams(
            dimension_semantics=("arbitrary",)),
    )(xp)

    g = gamma.reshape(1, C)
    b = beta.reshape(1, C)

    if residual is None:
        kern = functools.partial(_bn_norm_kernel, eps=eps, relu=relu,
                                 count=float(M), l2norm=l2norm)
        args = (xp, sums, sqs, g, b)
        in_specs = [row_spec, vec_spec, vec_spec, vec_spec, vec_spec]
    else:
        rp = jnp.pad(residual, ((0, Mp - M), (0, 0))) if Mp != M else residual
        kern = functools.partial(_bn_norm_add_relu_kernel, eps=eps,
                                 count=float(M))
        args = (xp, rp, sums, sqs, g, b)
        in_specs = [row_spec, row_spec, vec_spec, vec_spec, vec_spec, vec_spec]

    out = pl.pallas_call(
        kern,
        out_shape=jax.ShapeDtypeStruct((Mp, C), jnp.float32),
        grid_spec=pltpu.PrefetchScalarGridSpec(
            num_scalar_prefetch=0, grid=grid,
            in_specs=in_specs, out_specs=row_spec),
        compiler_params=pltpu.CompilerParams(
            dimension_semantics=("parallel",)),
    )(*args)
    return out[:M] if Mp != M else out


def maxpool3x3_s2_p1_nhwc(x):
    """x: (N, H, W, C) NHWC -> (N, Ho, Wo, C); 9-way max tree, C on lanes."""
    N, H, W, C = x.shape
    Ho = (H + 2 - 3) // 2 + 1
    Wo = (W + 2 - 3) // 2 + 1
    xp = jnp.pad(x, ((0, 0), (1, 1), (1, 1), (0, 0)),
                 constant_values=-jnp.inf)
    M = N * Ho * Wo
    tm = min(512, _round_up(M, 8))
    Mp = _round_up(M, tm)
    views = []
    for i in range(3):
        for j in range(3):
            v = xp[:, i:i + 2 * Ho:2, j:j + 2 * Wo:2, :].reshape(M, C)
            if Mp != M:
                v = jnp.pad(v, ((0, Mp - M), (0, 0)))
            views.append(v)
    row_spec = pl.BlockSpec((tm, C), lambda i: (i, 0))
    out = pl.pallas_call(
        _max9_kernel,
        out_shape=jax.ShapeDtypeStruct((Mp, C), jnp.float32),
        grid_spec=pltpu.PrefetchScalarGridSpec(
            num_scalar_prefetch=0, grid=(Mp // tm,),
            in_specs=[row_spec] * 9, out_specs=row_spec),
        compiler_params=pltpu.CompilerParams(
            dimension_semantics=("parallel",)),
    )(*views)
    out = out[:M] if Mp != M else out
    return out.reshape(N, Ho, Wo, C)


def global_avgpool_nhwc(y2d, N, HW, C):
    """y2d: (N*HW, C) -> (N, C); C on lanes, HW reduced on sublanes."""
    x = y2d.reshape(N, HW, C)
    out = pl.pallas_call(
        _gap_kernel,
        out_shape=jax.ShapeDtypeStruct((N, 1, C), jnp.float32),
        grid_spec=pltpu.PrefetchScalarGridSpec(
            num_scalar_prefetch=0, grid=(N,),
            in_specs=[pl.BlockSpec((1, HW, C), lambda n: (n, 0, 0))],
            out_specs=pl.BlockSpec((1, 1, C), lambda n: (n, 0, 0))),
        compiler_params=pltpu.CompilerParams(
            dimension_semantics=("parallel",)),
    )(x)
    return out.reshape(N, C)


# ------------------------------ JAX glue -------------------------------------

def im2col_nhwc(x, kh, kw, stride, pad):
    """x: (N, H, W, C) -> (N*Ho*Wo, kh*kw*C), C innermost (matches weight prep)."""
    N, H, W, C = x.shape
    Ho = (H + 2 * pad - kh) // stride + 1
    Wo = (W + 2 * pad - kw) // stride + 1
    if kh == 1 and kw == 1 and pad == 0:
        v = x[:, ::stride, ::stride, :] if stride > 1 else x
        return v.reshape(N * Ho * Wo, C), Ho, Wo
    xp = jnp.pad(x, ((0, 0), (pad, pad), (pad, pad), (0, 0)))
    views = []
    for i in range(kh):
        for j in range(kw):
            views.append(xp[:, i:i + stride * Ho:stride,
                            j:j + stride * Wo:stride, :])
    cols = jnp.stack(views, axis=3)              # (N, Ho, Wo, kh*kw, C)
    return cols.reshape(N * Ho * Wo, kh * kw * C), Ho, Wo


def conv2d_nhwc(x, wd, stride, pad):
    """x: (N, H, W, Cin) NHWC -> ((N*Ho*Wo, Cout) f32, Ho, Wo)."""
    k = wd['k']
    cols, Ho, Wo = im2col_nhwc(x, k, k, stride, pad)
    out = pallas_matmul(cols, wd)
    return out, Ho, Wo


# --------------------------- parameter creation ------------------------------

class KeyGen:
    def __init__(self, seed):
        self.key = jax.random.PRNGKey(seed)

    def __call__(self):
        self.key, sub = jax.random.split(self.key)
        return sub


def _prep_conv(w):
    """(Cout, Cin, kh, kw) -> padded (Kp, Np) bf16 with (kh, kw, Cin) row order."""
    cout, cin, kh, kw = w.shape
    wm = w.transpose(2, 3, 1, 0).reshape(kh * kw * cin, cout)
    K, Nn = wm.shape
    Kp, Np = _round_up(K, 128), _round_up(Nn, 128)
    wm = jnp.pad(wm, ((0, Kp - K), (0, Np - Nn))).astype(jnp.bfloat16)
    return {'w': wm, 'k': kh, 'cout': cout}


def _prep_linear(w):
    """(out_f, in_f) -> padded (Kp, Np) bf16, pre-transposed."""
    out_f, in_f = w.shape
    wm = w.T
    Kp, Np = _round_up(in_f, 128), _round_up(out_f, 128)
    wm = jnp.pad(wm, ((0, Kp - in_f), (0, Np - out_f))).astype(jnp.bfloat16)
    return {'w': wm, 'k': 1, 'cout': out_f}


def conv_init(kg, cout, cin, k):
    std = (2.0 / (cin * k * k)) ** 0.5
    w = jax.random.normal(kg(), (cout, cin, k, k), jnp.float32) * std
    return _prep_conv(w)


def linear_init(kg, out_f, in_f):
    std = (1.0 / in_f) ** 0.5
    w = jax.random.normal(kg(), (out_f, in_f), jnp.float32) * std
    return _prep_linear(w)


def make_bottleneck(kg, inplanes, planes, stride, downsample):
    p = {
        'stride': stride,
        'conv1': conv_init(kg, planes, inplanes, 1),
        'bn1_g': jnp.ones((planes,), jnp.float32),
        'bn1_b': jnp.zeros((planes,), jnp.float32),
        'conv2': conv_init(kg, planes, planes, 3),
        'bn2_g': jnp.ones((planes,), jnp.float32),
        'bn2_b': jnp.zeros((planes,), jnp.float32),
        'conv3': conv_init(kg, planes * 4, planes, 1),
        'bn3_g': jnp.ones((planes * 4,), jnp.float32),
        'bn3_b': jnp.zeros((planes * 4,), jnp.float32),
    }
    if downsample:
        p['down_conv'] = conv_init(kg, planes * 4, inplanes, 1)
        p['down_bn_g'] = jnp.ones((planes * 4,), jnp.float32)
        p['down_bn_b'] = jnp.zeros((planes * 4,), jnp.float32)
    return p


def make_layer(kg, inplanes, planes, blocks, stride):
    layer = [make_bottleneck(kg, inplanes, planes, stride, True)]
    for _ in range(blocks - 1):
        layer.append(make_bottleneck(kg, planes * 4, planes, 1, False))
    return layer


def init_params(seed, projector="256-128"):
    # TODO(synk): torchvision pretrained-weight loading has no in-script
    # equivalent; parameters are synthetic (deterministic PRNGKey init) with
    # the same shapes as ResNet50_SSL.
    kg = KeyGen(seed)
    sizes = [2048] + [int(s) for s in projector.split('-')]
    params = {
        'conv1': conv_init(kg, 64, 3, 7),
        'bn1_g': jnp.ones((64,), jnp.float32),
        'bn1_b': jnp.zeros((64,), jnp.float32),
        'layer1': make_layer(kg, 64, 64, 3, 1),
        'layer2': make_layer(kg, 256, 128, 4, 2),
        'layer3': make_layer(kg, 512, 256, 6, 2),
        'layer4': make_layer(kg, 1024, 512, 3, 2),
    }
    # projector: Linear(2048,256,bias=False) -> BN1d(256) -> ReLU -> Linear(256,128,bias=False)
    proj = []
    for i in range(len(sizes) - 2):
        proj.append({'lin': linear_init(kg, sizes[i + 1], sizes[i]),
                     'bn_g': jnp.ones((sizes[i + 1],), jnp.float32),
                     'bn_b': jnp.zeros((sizes[i + 1],), jnp.float32)})
    proj.append({'lin': linear_init(kg, sizes[-1], sizes[-2])})
    params['proj'] = proj
    params['out_dim'] = sizes[-1]
    return params


# -------------------------------- forward ------------------------------------

def bottleneck_forward(x, p):
    """x: (N, H, W, Cin) NHWC."""
    N, H, W, Cin = x.shape
    stride = p['stride']

    y, Ho, Wo = conv2d_nhwc(x, p['conv1'], 1, 0)
    y = batchnorm(y, p['bn1_g'], p['bn1_b'], relu=True)
    y = y.reshape(N, Ho, Wo, -1)

    y, Ho, Wo = conv2d_nhwc(y, p['conv2'], stride, 1)
    y = batchnorm(y, p['bn2_g'], p['bn2_b'], relu=True)
    y = y.reshape(N, Ho, Wo, -1)

    y, Ho, Wo = conv2d_nhwc(y, p['conv3'], 1, 0)       # (M, planes*4)

    if 'down_conv' in p:
        idn, _, _ = conv2d_nhwc(x, p['down_conv'], stride, 0)
        idn = batchnorm(idn, p['down_bn_g'], p['down_bn_b'], relu=False)
    else:
        idn = x.reshape(N * H * W, Cin)

    y = batchnorm(y, p['bn3_g'], p['bn3_b'], residual=idn)   # BN + add + ReLU
    return y.reshape(N, Ho, Wo, -1)


def resnet50_ssl_forward(params, x_nchw):
    N = x_nchw.shape[0]
    x = jnp.transpose(x_nchw, (0, 2, 3, 1))            # single NCHW -> NHWC

    # ---- backbone (torchvision ResNet-50, fc = Identity) ----
    y, Ho, Wo = conv2d_nhwc(x, params['conv1'], 2, 3)
    y = batchnorm(y, params['bn1_g'], params['bn1_b'], relu=True)
    y = maxpool3x3_s2_p1_nhwc(y.reshape(N, Ho, Wo, 64))
    for name in ('layer1', 'layer2', 'layer3', 'layer4'):
        for bp in params[name]:
            y = bottleneck_forward(y, bp)
    Nn, Hf, Wf, Cf = y.shape
    feat = global_avgpool_nhwc(y.reshape(Nn * Hf * Wf, Cf), Nn, Hf * Wf, Cf)

    # ---- projector ----
    z = feat
    for lp in params['proj'][:-1]:
        z = pallas_matmul(z, lp['lin'])
        z = batchnorm(z, lp['bn_g'], lp['bn_b'], relu=True)
    z = pallas_matmul(z, params['proj'][-1]['lin'])

    # ---- BatchNorm1d(affine=False) + F.normalize(dim=-1), fused ----
    C = z.shape[1]
    z = batchnorm(z, jnp.ones((C,), jnp.float32), jnp.zeros((C,), jnp.float32),
                  relu=False, l2norm=True)
    return z


# --------------------------------- main ---------------------------------------

if __name__ == "__main__":
    params = init_params(seed=0, projector="256-128")

    key = jax.random.PRNGKey(0)
    x = jax.random.normal(key, (2, 3, 16, 16), dtype=jnp.float32)  # small NCHW input

    z = resnet50_ssl_forward(params, x)
    z = jax.block_until_ready(z)

    assert z.shape == (2, params['out_dim'])
    assert bool(jnp.all(jnp.isfinite(z)))
    # output rows are L2-normalized
    assert bool(jnp.allclose(jnp.sum(z * z, axis=-1), 1.0, atol=1e-3))
    print("KERNEL_OK")
</pallas_src>

<mosaic_0001>
module attributes {stable_mosaic.version = 11 : i64} {
  func.func @_matmul_kernel(%arg0: i32, %arg1: i32, %arg2: i32, %arg3: memref<64x256xbf16, #tpu.memory_space<vmem>>, %arg4: memref<256x128xbf16, #tpu.memory_space<vmem>>, %arg5: memref<64x128xf32, #tpu.memory_space<vmem>>, %arg6: memref<64x128xf32, #tpu.memory_space<vmem>>) attributes {dimension_semantics = [#tpu.dimension_semantics<parallel>, #tpu.dimension_semantics<parallel>, #tpu.dimension_semantics<arbitrary>], iteration_bounds = array<i64: 2, 1, 1>, scalar_prefetch = 0 : i64, scratch_operands = 1 : i64, tpu.core_type = #tpu.core_type<tc>, window_params = [{transform_indices = @transform_0, window_bounds = array<i64: 64, 256>}, {transform_indices = @transform_1, window_bounds = array<i64: 256, 128>}, {transform_indices = @transform_2, window_bounds = array<i64: 64, 128>}]} {
    %c0_i32 = arith.constant 0 : i32
    %0 = arith.cmpi eq, %arg2, %c0_i32 : i32
    %1 = arith.extui %0 : i1 to i32
    %c0_i32_0 = arith.constant 0 : i32
    %2 = arith.cmpi ne, %1, %c0_i32_0 : i32
    scf.if %2 {
      %cst_10 = arith.constant 0.000000e+00 : f32
      %12 = vector.broadcast %cst_10 : f32 to vector<64x128xf32>
      %c0_11 = arith.constant 0 : index
      %c0_12 = arith.constant 0 : index
      %13 = vector.load %arg6[%c0_11, %c0_12] : memref<64x128xf32, #tpu.memory_space<vmem>>, vector<64x128xf32>
      tpu.vector_store %arg6[%c0_11, %c0_12], %12 {strides = array<i32>} : memref<64x128xf32, #tpu.memory_space<vmem>>, vector<64x128xf32>,
    } else {
    }
    %c0 = arith.constant 0 : index
    %c0_1 = arith.constant 0 : index
    %3 = vector.load %arg6[%c0, %c0_1] : memref<64x128xf32, #tpu.memory_space<vmem>>, vector<64x128xf32>
    %c0_2 = arith.constant 0 : index
    %c0_3 = arith.constant 0 : index
    %4 = vector.load %arg3[%c0_2, %c0_3] : memref<64x256xbf16, #tpu.memory_space<vmem>>, vector<64x256xbf16>
    %c0_4 = arith.constant 0 : index
    %c0_5 = arith.constant 0 : index
    %5 = vector.load %arg4[%c0_4, %c0_5] : memref<256x128xbf16, #tpu.memory_space<vmem>>, vector<256x128xbf16>
    %cst = arith.constant dense<0.000000e+00> : vector<64x128xf32>
    %6 = tpu.matmul %4, %5, %cst {dimension_numbers = #tpu.dot_dimension_numbers<[1], [0], [0], [1], [0, 0, 1, 1], [], []>} : vector<64x256xbf16>, vector<256x128xbf16>, vector<64x128xf32> -> vector<64x128xf32>
    %7 = arith.addf %3, %6 : vector<64x128xf32>
    %c0_6 = arith.constant 0 : index
    %c0_7 = arith.constant 0 : index
    %8 = vector.load %arg6[%c0_6, %c0_7] : memref<64x128xf32, #tpu.memory_space<vmem>>, vector<64x128xf32>
    tpu.vector_store %arg6[%c0_6, %c0_7], %7 {strides = array<i32>} : memref<64x128xf32, #tpu.memory_space<vmem>>, vector<64x128xf32>,
    %c0_i32_8 = arith.constant 0 : i32
    %9 = arith.cmpi eq, %arg2, %c0_i32_8 : i32
    %10 = arith.extui %9 : i1 to i32
    %c0_i32_9 = arith.constant 0 : i32
    %11 = arith.cmpi ne, %10, %c0_i32_9 : i32
    scf.if %11 {
      %c0_10 = arith.constant 0 : index
      %c0_11 = arith.constant 0 : index
      %12 = vector.load %arg6[%c0_10, %c0_11] : memref<64x128xf32, #tpu.memory_space<vmem>>, vector<64x128xf32>
      %c0_12 = arith.constant 0 : index
      %c0_13 = arith.constant 0 : index
      %13 = vector.load %arg5[%c0_12, %c0_13] : memref<64x128xf32, #tpu.memory_space<vmem>>, vector<64x128xf32>
      tpu.vector_store %arg5[%c0_12, %c0_13], %12 {strides = array<i32>} : memref<64x128xf32, #tpu.memory_space<vmem>>, vector<64x128xf32>,
    } else {
    }
    return
  }
  func.func @transform_0(%arg0: i32, %arg1: i32, %arg2: i32) -> (i32, i32) {
    %c0_i32 = arith.constant 0 : i32
    return %arg0, %arg2 : i32, i32
  }
  func.func @transform_1(%arg0: i32, %arg1: i32, %arg2: i32) -> (i32, i32) {
    %c0_i32 = arith.constant 0 : i32
    return %arg2, %arg1 : i32, i32
  }
  func.func @transform_2(%arg0: i32, %arg1: i32, %arg2: i32) -> (i32, i32) {
    %c0_i32 = arith.constant 0 : i32
    return %arg0, %arg1 : i32, i32
  }
}

</mosaic_0001>

<llo_original>
// kernel: tpu_custom_call.1
$region0: #{tpu_custom_call.1}
  #allocation0 [shape = 'u32[]', space=smem, size = 0x4, offset = 0x4, fixed_abs, tag = 'smem constant byte address 0x4 - core index']
  #allocation1 [shape = 'u32[144,128]{1,0:T(1,128)}', space=vmem, size = 0x12000, scoped, tag = 'internal scratch']
  #allocation2 [shape = 'f32[64,128]{1,0:T(8,128)}', space=vmem, size = 0x8000, scoped, tag = 'scratch operand']
  %s0 = inlined_call_operand.hbm [shape: bf16[128,256], index: 0, kind: input, shape index: {}]
  %s1 = inlined_call_operand.hbm [shape: bf16[256,128], index: 1, kind: input, shape index: {}]
  %s2 = inlined_call_operand.hbm [shape: f32[128,128], index: 2, kind: output, shape index: {}]
  %s3 = sld [smem:[#allocation0]]
  $region57: #{tpu_custom_call.1} parent=0
    _
  %s5 = ssub.s32 1, %s3
  %s6 = scalar_select 0, %s5, %s3
  $region1: #{tpu_custom_call.1} parent=0
    #allocation3 [shape = 'u8[65536]{0}', space=vmem, size = 0x10000, scoped, tag = 'input window, operand 0']
    #allocation4 [shape = 's32[2]{0}', space=sflag, size = 0x8, scoped, tag = 'scoped memory for tpu_custom_call.1']
    #allocation5 [shape = 's32[2]{0}', space=sflag, size = 0x8, scoped, tag = 'scoped memory for tpu_custom_call.1']
    #allocation6 [shape = 'u8[65536]{0}', space=vmem, size = 0x10000, scoped, tag = 'input window, operand 1, single buffered']
    #allocation7 [shape = 's32[1]{0}', space=sflag, size = 0x4, scoped, tag = 'scoped memory for tpu_custom_call.1']
    #allocation8 [shape = 'u8[65536]{0}', space=vmem, size = 0x10000, scoped, tag = 'output window, operand 0']
    %7 = vsyncpa [#allocation4], 0
    %s8 = scalar_lea.sflag [#allocation4], 1
    %9 = vsyncpa %s8, 0
    %10 = vsyncpa [#allocation7], 0
    %11 = vsyncpa [#allocation5], 0
    %s12 = scalar_lea.sflag [#allocation5], 1
    %13 = vsyncpa %s12, 0
    loop: start=0, step=1, limit=4
    $region2: #{tpu_custom_call.1} parent=1 // loop_pre_header
      _
    $region3: #{tpu_custom_call.1} parent=1 // loop_header
      %s15 = sphi 0, %s19
      %p16 = scmp.ge.s32.totalorder %s15, 4
      %s22 = sphi 0, %s41
      %s23 = sphi 0, %s37
      %s24 = sphi 0, %s33
      %s25 = sphi 0, %s22
      %s26 = sphi 0, %s23
      %s27 = sphi 0, %s24
      %s28 = sphi 0, %s25
      %s29 = sphi 0, %s26
      %s30 = sphi 0, %s27
      %s46 = sphi 0, %s48
      %s49 = sphi 0, %s46
      %s50 = sphi 0, %s49
      %s66 = sphi 0, %s50
      %s74 = sphi 0, %s76
      %s77 = sphi 0, %s74
      %s78 = sphi 0, %s77
      %s94 = sphi 0, %s78
      %s102 = sphi 0, %s104
      %s105 = sphi 0, %s102
      %s106 = sphi 0, %s105
      %s122 = sphi 0, %s106
    $region4: #{tpu_custom_call.1} parent=1 // loop_header_branch
      %18 = sbr.rel (%p16) target = $region8
    $region5: #{tpu_custom_call.1} parent=1 // loop_body
      %s20 = ssub.s32 %s15, 1
      %s21 = ssub.s32 %s15, 2
      %s31 = sadd.s32 1, %s24
      %p32 = scmp.ge.s32.totalorder %s31, 1
      %s33 = scalar_select %p32, 0, %s31
      %s34 = sadd.s32 1, %s23
      %s35 = scalar_select %p32, %s34, %s23
      %p36 = scmp.ge.s32.totalorder %s35, 1
      %s37 = scalar_select %p36, 0, %s35
      %s38 = sadd.s32 1, %s22
      %s39 = scalar_select %p36, %s38, %s22
      %p40 = scmp.ge.s32.totalorder %s39, 2
      %s41 = scalar_select %p40, 0, %s39
      %s42 = ssub.s32 %s22, %s41
      %s43 = ssub.s32 %s24, %s33
      %s44 = sor.u32 %s42, %s43
      %p45 = scmp.eq.s32.totalorder %s44, 0
      %s47 = sadd.s32 %s46, 1
      %s48 = scalar_select %p45, %s46, %s47
      %p51 = pneg %p45
      %p52 = scmp.eq.s32.totalorder %s15, 1
      %p53 = por %p51, %p52
      %p54 = scmp.ne.s32.totalorder %s46, %s49
      %p55 = scmp.eq.s32.totalorder %s15, 0
      %p56 = por %p54, %p55
      %p57 = scmp.ne.s32.totalorder %s46, %s49
      %p58 = scmp.eq.s32.totalorder %s20, 1
      %p59 = por %p57, %p58
      %p60 = scmp.ne.s32.totalorder %s49, %s50
      %p61 = scmp.eq.s32.totalorder %s20, 0
      %p62 = por %p60, %p61
      %p63 = scmp.ne.s32.totalorder %s49, %s50
      %p64 = scmp.eq.s32.totalorder %s21, 1
      %p65 = por %p63, %p64
      %p67 = scmp.ne.s32.totalorder %s50, %s66
      %p68 = scmp.eq.s32.totalorder %s21, 0
      %p69 = por %p67, %p68
      %s70 = ssub.s32 %s24, %s33
      %s71 = ssub.s32 %s23, %s37
      %s72 = sor.u32 %s70, %s71
      %p73 = scmp.eq.s32.totalorder %s72, 0
      %s75 = sadd.s32 %s74, 1
      %s76 = scalar_select %p73, %s74, %s75
      %p79 = pneg %p73
      %p80 = scmp.eq.s32.totalorder %s15, 1
      %p81 = por %p79, %p80
      %p82 = scmp.ne.s32.totalorder %s74, %s77
      %p83 = scmp.eq.s32.totalorder %s15, 0
      %p84 = por %p82, %p83
      %p85 = scmp.ne.s32.totalorder %s74, %s77
      %p86 = scmp.eq.s32.totalorder %s20, 1
      %p87 = por %p85, %p86
      %p88 = scmp.ne.s32.totalorder %s77, %s78
      %p89 = scmp.eq.s32.totalorder %s20, 0
      %p90 = por %p88, %p89
      %p91 = scmp.ne.s32.totalorder %s77, %s78
      %p92 = scmp.eq.s32.totalorder %s21, 1
      %p93 = por %p91, %p92
      %p95 = scmp.ne.s32.totalorder %s78, %s94
      %p96 = scmp.eq.s32.totalorder %s21, 0
      %p97 = por %p95, %p96
      %s98 = ssub.s32 %s22, %s41
      %s99 = ssub.s32 %s23, %s37
      %s100 = sor.u32 %s98, %s99
      %p101 = scmp.eq.s32.totalorder %s100, 0
      %s103 = sadd.s32 %s102, 1
      %s104 = scalar_select %p101, %s102, %s103
      %p107 = pneg %p101
      %p108 = scmp.eq.s32.totalorder %s15, 1
      %p109 = por %p107, %p108
      %p110 = scmp.ne.s32.totalorder %s102, %s105
      %p111 = scmp.eq.s32.totalorder %s15, 0
      %p112 = por %p110, %p111
      %p113 = scmp.ne.s32.totalorder %s102, %s105
      %p114 = scmp.eq.s32.totalorder %s20, 1
      %p115 = por %p113, %p114
      %p116 = scmp.ne.s32.totalorder %s105, %s106
      %p117 = scmp.eq.s32.totalorder %s20, 0
      %p118 = por %p116, %p117
      %p119 = scmp.ne.s32.totalorder %s105, %s106
      %p120 = scmp.eq.s32.totalorder %s21, 1
      %p121 = por %p119, %p120
      %p123 = scmp.ne.s32.totalorder %s106, %s122
      %p124 = scmp.eq.s32.totalorder %s21, 0
      %p125 = por %p123, %p124
      %p126 = scmp.le.s32.totalorder 1, %s15
      %p127 = scmp.lt.s32.totalorder %s15, 3
      %p128 = pnand %p126, %p127
      %p129 = pneg %p128
      // Predicated region
      $region9: #{tpu_custom_call.1} parent=5 // pred_check
        _
      $region10: #{tpu_custom_call.1} parent=5 // pred_check_branch
        %131 = sbr.rel (%p128) target = $region12
      $region11: #{tpu_custom_call.1} parent=5 // pred_region
        %s132 = ssub.s32 %s15, 1
        // Predicated region
        $region13: #{tpu_custom_call.1} parent=11 // pred_check
          %p133 = pneg %p90
        $region14: #{tpu_custom_call.1} parent=11 // pred_check_branch
          %135 = sbr.rel (%p133) target = $region16
        $region15: #{tpu_custom_call.1} parent=11 // pred_region
          %s136 = smul.u32 32, %s27
          %s138 = ssub.s32 2048, 2048
          %139 = vsyncadd [#allocation7], %s138
          %s140 = sadd.s32 %s26, %s136
          %s141 = smul.addr %s140, 64
          %s142 = scalar_lea.hbm %s1, %s141
          %s143 = sshll.u32 [#allocation6], 4
          %s144 = int_to_ptr.vmem [resolvable:$true] %s143
          %149 = dma.hbm_to_vmem [thread:$0]  %s142, 2048, %s144, [#allocation7], 64, 64, 4
        $region16: #{tpu_custom_call.1} parent=11 // pred_fallthru
          _
      $region12: #{tpu_custom_call.1} parent=5 // pred_fallthru
        _
      %p150 = scmp.lt.s32.totalorder %s15, 2
      // Predicated region
      $region17: #{tpu_custom_call.1} parent=5 // pred_check
        %p151 = pneg %p150
      $region18: #{tpu_custom_call.1} parent=5 // pred_check_branch
        %153 = sbr.rel (%p151) target = $region20
      $region19: #{tpu_custom_call.1} parent=5 // pred_region
        // Predicated region
        $region21: #{tpu_custom_call.1} parent=19 // pred_check
          %p154 = pneg %p56
        $region22: #{tpu_custom_call.1} parent=19 // pred_check_branch
          %156 = sbr.rel (%p154) target = $region24
        $region23: #{tpu_custom_call.1} parent=19 // pred_region
          %s157 = sand.u32 %s46, 1
          %s158 = scalar_lea.sflag [#allocation4], %s157
          %s159 = sand.u32 %s46, 1
          %s160 = smul.addr %s159, 64
          %s161 = scalar_lea.vmem [#allocation3], %s160
          %s162 = smul.u32 8, %s22
          %s163 = smul.u32 2, %s24
          %s165 = ssub.s32 1024, 1024
          %166 = vsyncadd %s158, %s165
          %s167 = smul.addr %s162, 2
          %s168 = sadd.s32 %s163, %s167
          %s169 = smul.addr %s168, 64
          %s170 = scalar_lea.hbm %s0, %s169
          %s171 = sshll.u32 %s161, 4
          %s172 = int_to_ptr.vmem [resolvable:$true] %s171
          %177 = dma.hbm_to_vmem [thread:$0]  %s170, 1024, %s172, %s158, 128, 128, 8
        $region24: #{tpu_custom_call.1} parent=19 // pred_fallthru
          _
      $region20: #{tpu_custom_call.1} parent=5 // pred_fallthru
        _
      %p178 = scmp.le.s32.totalorder 1, %s15
      %p179 = scmp.lt.s32.totalorder %s15, 3
      %p180 = pnand %p178, %p179
      %p181 = pneg %p180
      // Predicated region
      $region25: #{tpu_custom_call.1} parent=5 // pred_check
        _
      $region26: #{tpu_custom_call.1} parent=5 // pred_check_branch
        %183 = sbr.rel (%p180) target = $region28
      $region27: #{tpu_custom_call.1} parent=5 // pred_region
        %s184 = ssub.s32 %s15, 1
        %s185 = sand.u32 %s49, 1
        %s186 = scalar_lea.sflag [#allocation4], %s185
        %s187 = sand.u32 %s49, 1
        %s188 = smul.addr %s187, 64
        %s189 = scalar_lea.vmem [#allocation3], %s188
        // Predicated region
        $region29: #{tpu_custom_call.1} parent=27 // pred_check
          %p190 = pneg %p62
        $region30: #{tpu_custom_call.1} parent=27 // pred_check_branch
          %192 = sbr.rel (%p190) target = $region32
        $region31: #{tpu_custom_call.1} parent=27 // pred_region
          %193 = dma.done %s186, 1024
        $region32: #{tpu_custom_call.1} parent=27 // pred_fallthru
          _
        // Predicated region
        $region33: #{tpu_custom_call.1} parent=27 // pred_check
          %p194 = pneg %p90
        $region34: #{tpu_custom_call.1} parent=27 // pred_check_branch
          %196 = sbr.rel (%p194) target = $region36
        $region35: #{tpu_custom_call.1} parent=27 // pred_region
          %197 = dma.done [#allocation7], 2048
        $region36: #{tpu_custom_call.1} parent=27 // pred_fallthru
          _
        %s198 = sand.u32 %s49, 1
        %s199 = scalar_lea.sflag [#allocation4], %s198
        %s200 = sand.u32 %s49, 1
        %s201 = smul.addr %s200, 64
        %s202 = scalar_lea.vmem [#allocation3], %s201
        %p203 = pneg %p62
        %p204 = pneg %p59
        %p205 = pneg %p90
        %p206 = pneg %p87
        %p207 = pneg %p118
        %p208 = pneg %p115
        %s209 = sand.u32 %s105, 1
        %s210 = scalar_lea.sflag [#allocation5], %s209
        %s211 = sand.u32 %s105, 1
        %s212 = smul.addr %s211, 64
        %s213 = scalar_lea.vmem [#allocation8], %s212
        %s214 = smul.u32 8, %s25
        %s215 = smul.u32 2, %s27
        %s216 = smul.u32 32, %s27
        %s217 = smul.u32 8, %s25
        %p219 = scmp.eq.s32.totalorder %s27, 0
        // Predicated region
        $region37: #{tpu_custom_call.1} parent=27 // pred_check
          %p220 = pneg %p219
        $region38: #{tpu_custom_call.1} parent=27 // pred_check_branch
          %222 = sbr.rel (%p220) target = $region40
        $region39: #{tpu_custom_call.1} parent=27 // pred_region
          %223 = vst [vmem:[#allocation2] sm:$0xff] 0.0
          %224 = vst [vmem:[#allocation2 + $0x8] sm:$0xff] 0.0
          %225 = vst [vmem:[#allocation2 + $0x10] sm:$0xff] 0.0
          %226 = vst [vmem:[#allocation2 + $0x18] sm:$0xff] 0.0
          %227 = vst [vmem:[#allocation2 + $0x20] sm:$0xff] 0.0
          %228 = vst [vmem:[#allocation2 + $0x28] sm:$0xff] 0.0
          %229 = vst [vmem:[#allocation2 + $0x30] sm:$0xff] 0.0
          %230 = vst [vmem:[#allocation2 + $0x38] sm:$0xff] 0.0
        $region40: #{tpu_custom_call.1} parent=27 // pred_fallthru
          _
        %v231 = vld [vmem:[#allocation2] sm:$0xff]
        %v232 = vld [vmem:[#allocation2 + $0x8] sm:$0xff]
        %v233 = vld [vmem:[#allocation2 + $0x10] sm:$0xff]
        %v234 = vld [vmem:[#allocation2 + $0x18] sm:$0xff]
        %v235 = vld [vmem:[#allocation2 + $0x20] sm:$0xff]
        %v236 = vld [vmem:[#allocation2 + $0x28] sm:$0xff]
        %v237 = vld [vmem:[#allocation2 + $0x30] sm:$0xff]
        %v238 = vld [vmem:[#allocation2 + $0x38] sm:$0xff]
        %v239 = vld [vmem:[%s189] sm:$0xff]
        %v240 = vld [vmem:[%s189 + $0x8] sm:$0xff]
        %v241 = vld [vmem:[%s189 + $0x10] sm:$0xff]
        %v242 = vld [vmem:[%s189 + $0x18] sm:$0xff]
        %v243 = vld [vmem:[%s189 + $0x20] sm:$0xff]
        %v244 = vld [vmem:[%s189 + $0x28] sm:$0xff]
        %v245 = vld [vmem:[%s189 + $0x30] sm:$0xff]
        %v246 = vld [vmem:[%s189 + $0x38] sm:$0xff]
        %v247 = vld [vmem:[#allocation6] sm:$0xf]
        %v248 = vld [vmem:[#allocation6 + $0x4] sm:$0xf]
        %v249 = vld [vmem:[#allocation6 + $0x8] sm:$0xf]
        %v250 = vld [vmem:[#allocation6 + $0xc] sm:$0xf]
        %v251 = vld [vmem:[#allocation6 + $0x10] sm:$0xf]
        %v252 = vld [vmem:[#allocation6 + $0x14] sm:$0xf]
        %v253 = vld [vmem:[#allocation6 + $0x18] sm:$0xf]
        %v254 = vld [vmem:[#allocation6 + $0x1c] sm:$0xf]
        %v255 = vld [vmem:[#allocation6 + $0x20] sm:$0xf]
        %v256 = vld [vmem:[#allocation6 + $0x24] sm:$0xf]
        %v257 = vld [vmem:[#allocation6 + $0x28] sm:$0xf]
        %v258 = vld [vmem:[#allocation6 + $0x2c] sm:$0xf]
        %v259 = vld [vmem:[#allocation6 + $0x30] sm:$0xf]
        %v260 = vld [vmem:[#allocation6 + $0x34] sm:$0xf]
        %v261 = vld [vmem:[#allocation6 + $0x38] sm:$0xf]
        %v262 = vld [vmem:[#allocation6 + $0x3c] sm:$0xf]
        %v263 = vld [vmem:[#allocation6 + $0x40] sm:$0xf]
        %v264 = vld [vmem:[#allocation6 + $0x44] sm:$0xf]
        %v265 = vld [vmem:[#allocation6 + $0x48] sm:$0xf]
        %v266 = vld [vmem:[#allocation6 + $0x4c] sm:$0xf]
        %v267 = vld [vmem:[#allocation6 + $0x50] sm:$0xf]
        %v268 = vld [vmem:[#allocation6 + $0x54] sm:$0xf]
        %v269 = vld [vmem:[#allocation6 + $0x58] sm:$0xf]
        %v270 = vld [vmem:[#allocation6 + $0x5c] sm:$0xf]
        %v271 = vld [vmem:[#allocation6 + $0x60] sm:$0xf]
        %v272 = vld [vmem:[#allocation6 + $0x64] sm:$0xf]
        %v273 = vld [vmem:[#allocation6 + $0x68] sm:$0xf]
        %v274 = vld [vmem:[#allocation6 + $0x6c] sm:$0xf]
        %v275 = vld [vmem:[#allocation6 + $0x70] sm:$0xf]
        %v276 = vld [vmem:[#allocation6 + $0x74] sm:$0xf]
        %v277 = vld [vmem:[#allocation6 + $0x78] sm:$0xf]
        %v278 = vld [vmem:[#allocation6 + $0x7c] sm:$0xf]
        %v287 = vunpack.c.l.b16 %v239
        %v288 = vunpack.c.h.b16 %v239
        %v289 = vunpack.c.l.b16 %v240
        %v290 = vunpack.c.h.b16 %v240
        %v291 = vunpack.c.l.b16 %v241
        %v292 = vunpack.c.h.b16 %v241
        %v293 = vunpack.c.l.b16 %v242
        %v294 = vunpack.c.h.b16 %v242
        %v295 = vunpack.c.l.b16 %v243
        %v296 = vunpack.c.h.b16 %v243
        %v297 = vunpack.c.l.b16 %v244
        %v298 = vunpack.c.h.b16 %v244
        %v299 = vunpack.c.l.b16 %v245
        %v300 = vunpack.c.h.b16 %v245
        %v301 = vunpack.c.l.b16 %v246
        %v302 = vunpack.c.h.b16 %v246
        %v303 = vpack.c.b16 %v289, %v287
        %v304 = vpack.c.b16 %v290, %v288
        %v305 = vpack.c.b16 %v293, %v291
        %v306 = vpack.c.b16 %v294, %v292
        %v307 = vpack.c.b16 %v297, %v295
        %v308 = vpack.c.b16 %v298, %v296
        %v309 = vpack.c.b16 %v301, %v299
        %v310 = vpack.c.b16 %v302, %v300
        %v351 = vunpack.c.l.b16 %v247
        %v352 = vunpack.c.l.b16 %v248
        %v353 = vunpack.c.l.b16 %v249
        %v354 = vunpack.c.l.b16 %v250
        %v355 = vunpack.c.l.b16 %v251
        %v356 = vunpack.c.l.b16 %v252
        %v357 = vunpack.c.l.b16 %v253
        %v358 = vunpack.c.l.b16 %v254
        %v359 = vunpack.c.l.b16 %v255
        %v360 = vunpack.c.l.b16 %v256
        %v361 = vunpack.c.l.b16 %v257
        %v362 = vunpack.c.l.b16 %v258
        %v363 = vunpack.c.l.b16 %v259
        %v364 = vunpack.c.l.b16 %v260
        %v365 = vunpack.c.l.b16 %v261
        %v366 = vunpack.c.l.b16 %v262
        %v367 = vunpack.c.l.b16 %v263
        %v368 = vunpack.c.l.b16 %v264
        %v369 = vunpack.c.l.b16 %v265
        %v370 = vunpack.c.l.b16 %v266
        %v371 = vunpack.c.l.b16 %v267
        %v372 = vunpack.c.l.b16 %v268
        %v373 = vunpack.c.l.b16 %v269
        %v374 = vunpack.c.l.b16 %v270
        %v375 = vunpack.c.l.b16 %v271
        %v376 = vunpack.c.l.b16 %v272
        %v377 = vunpack.c.l.b16 %v273
        %v378 = vunpack.c.l.b16 %v274
        %v379 = vunpack.c.l.b16 %v275
        %v380 = vunpack.c.l.b16 %v276
        %v381 = vunpack.c.l.b16 %v277
        %v382 = vunpack.c.l.b16 %v278
        %v383 = vpack.c.b16 %v352, %v351
        %v384 = vpack.c.b16 %v354, %v353
        %v385 = vpack.c.b16 %v356, %v355
        %v386 = vpack.c.b16 %v358, %v357
        %v387 = vpack.c.b16 %v360, %v359
        %v388 = vpack.c.b16 %v362, %v361
        %v389 = vpack.c.b16 %v364, %v363
        %v390 = vpack.c.b16 %v366, %v365
        %v391 = vpack.c.b16 %v368, %v367
        %v392 = vpack.c.b16 %v370, %v369
        %v393 = vpack.c.b16 %v372, %v371
        %v394 = vpack.c.b16 %v374, %v373
        %v395 = vpack.c.b16 %v376, %v375
        %v396 = vpack.c.b16 %v378, %v377
        %v397 = vpack.c.b16 %v380, %v379
        %v398 = vpack.c.b16 %v382, %v381
        %415 = vmatprep.subr.bf16.mxu0 0
        %416 = vmatpush1.bf16.msra.mxu0 %v390
        %417 = vmatprep.subr.bf16.mxu0 0
        %418 = vmatpush1.bf16.msra.mxu0 %v389
        %419 = vmatprep.subr.bf16.mxu0 0
        %420 = vmatpush1.bf16.msra.mxu0 %v388
        %421 = vmatprep.subr.bf16.mxu0 0
        %422 = vmatpush1.bf16.msra.mxu0 %v387
        %423 = vmatprep.subr.bf16.mxu0 0
        %424 = vmatpush1.bf16.msra.mxu0 %v386
        %425 = vmatprep.subr.bf16.mxu0 0
        %426 = vmatpush1.bf16.msra.mxu0 %v385
        %427 = vmatprep.subr.bf16.mxu0 0
        %428 = vmatpush1.bf16.msra.mxu0 %v384
        %429 = vmatprep.subr.bf16.mxu0 0
        %430 = vmatpush1.bf16.msra.mxu0 %v383
        %431 = vmatprep.subr.bf16.mxu0 0
        %432 = vmatpush2.bf16.msra.mxu0 %v398
        %433 = vmatprep.subr.bf16.mxu0 0
        %434 = vmatpush2.bf16.msra.mxu0 %v397
        %435 = vmatprep.subr.bf16.mxu0 0
        %436 = vmatpush2.bf16.msra.mxu0 %v396
        %437 = vmatprep.subr.bf16.mxu0 0
        %438 = vmatpush2.bf16.msra.mxu0 %v395
        %439 = vmatprep.subr.bf16.mxu0 0
        %440 = vmatpush2.bf16.msra.mxu0 %v394
        %441 = vmatprep.subr.bf16.mxu0 0
        %442 = vmatpush2.bf16.msra.mxu0 %v393
        %443 = vmatprep.subr.bf16.mxu0 0
        %444 = vmatpush2.bf16.msra.mxu0 %v392
        %445 = vmatprep.subr.bf16.mxu0 0
        %446 = vmatpush2.bf16.msra.mxu0 %v391
        %447 = vmatprep.mubr.bf16.mxu0 %v304
        %448 = vmatmul.mubr.bf16.gmra.mxu0 %v303
        %v449 = vpop.f32.mrf.mxu0
        %v450 = vadd.f32 0.0, %v449
        %v451 = vpop.f32.mrf.mxu0
        %v452 = vpop.f32.mrf.mxu0
        %v453 = vadd.f32 0.0, %v452
        %v454 = vpop.f32.mrf.mxu0
        %455 = vmatprep.mubr.bf16.mxu0 %v306
        %456 = vmatmul.mubr.bf16.gmra.mxu0 %v305
        %v457 = vpop.f32.mrf.mxu0
        %v458 = vadd.f32 0.0, %v457
        %v459 = vpop.f32.mrf.mxu0
        %v460 = vpop.f32.mrf.mxu0
        %v461 = vadd.f32 0.0, %v460
        %v462 = vpop.f32.mrf.mxu0
        %463 = vmatprep.mubr.bf16.mxu0 %v308
        %464 = vmatmul.mubr.bf16.gmra.mxu0 %v307
        %v465 = vpop.f32.mrf.mxu0
        %v466 = vadd.f32 0.0, %v465
        %v467 = vpop.f32.mrf.mxu0
        %v468 = vpop.f32.mrf.mxu0
        %v469 = vadd.f32 0.0, %v468
        %v470 = vpop.f32.mrf.mxu0
        %471 = vmatprep.mubr.bf16.mxu0 %v310
        %472 = vmatmul.mubr.bf16.gmra.mxu0 %v309
        %v473 = vpop.f32.mrf.mxu0
        %v474 = vadd.f32 0.0, %v473
        %v475 = vpop.f32.mrf.mxu0
        %v476 = vpop.f32.mrf.mxu0
        %v477 = vadd.f32 0.0, %v476
        %v478 = vpop.f32.mrf.mxu0
        %479 = vdwg.mxu0
        %v480 = vadd.f32 %v231, %v450
        %v481 = vadd.f32 %v232, %v453
        %v482 = vadd.f32 %v233, %v458
        %v483 = vadd.f32 %v234, %v461
        %v484 = vadd.f32 %v235, %v466
        %v485 = vadd.f32 %v236, %v469
        %v486 = vadd.f32 %v237, %v474
        %v487 = vadd.f32 %v238, %v477
        %488 = vst [vmem:[#allocation2] sm:$0xff] %v480
        %489 = vst [vmem:[#allocation2 + $0x8] sm:$0xff] %v481
        %490 = vst [vmem:[#allocation2 + $0x10] sm:$0xff] %v482
        %491 = vst [vmem:[#allocation2 + $0x18] sm:$0xff] %v483
        %492 = vst [vmem:[#allocation2 + $0x20] sm:$0xff] %v484
        %493 = vst [vmem:[#allocation2 + $0x28] sm:$0xff] %v485
        %494 = vst [vmem:[#allocation2 + $0x30] sm:$0xff] %v486
        %495 = vst [vmem:[#allocation2 + $0x38] sm:$0xff] %v487
        // Predicated region
        $region41: #{tpu_custom_call.1} parent=27 // pred_check
          %p496 = pneg %p219
        $region42: #{tpu_custom_call.1} parent=27 // pred_check_branch
          %498 = sbr.rel (%p496) target = $region44
        $region43: #{tpu_custom_call.1} parent=27 // pred_region
          %v499 = vld [vmem:[#allocation2] sm:$0xff]
          %v500 = vld [vmem:[#allocation2 + $0x8] sm:$0xff]
          %v501 = vld [vmem:[#allocation2 + $0x10] sm:$0xff]
          %v502 = vld [vmem:[#allocation2 + $0x18] sm:$0xff]
          %v503 = vld [vmem:[#allocation2 + $0x20] sm:$0xff]
          %v504 = vld [vmem:[#allocation2 + $0x28] sm:$0xff]
          %v505 = vld [vmem:[#allocation2 + $0x30] sm:$0xff]
          %v506 = vld [vmem:[#allocation2 + $0x38] sm:$0xff]
          %507 = vst [vmem:[%s213] sm:$0xff] %v499
          %508 = vst [vmem:[%s213 + $0x8] sm:$0xff] %v500
          %509 = vst [vmem:[%s213 + $0x10] sm:$0xff] %v501
          %510 = vst [vmem:[%s213 + $0x18] sm:$0xff] %v502
          %511 = vst [vmem:[%s213 + $0x20] sm:$0xff] %v503
          %512 = vst [vmem:[%s213 + $0x28] sm:$0xff] %v504
          %513 = vst [vmem:[%s213 + $0x30] sm:$0xff] %v505
          %514 = vst [vmem:[%s213 + $0x38] sm:$0xff] %v506
        $region44: #{tpu_custom_call.1} parent=27 // pred_fallthru
          _
        %s515 = sand.u32 %s105, 1
        %s516 = scalar_lea.sflag [#allocation5], %s515
        %s517 = sand.u32 %s105, 1
        %s518 = smul.addr %s517, 64
        %s519 = scalar_lea.vmem [#allocation8], %s518
        // Predicated region
        $region45: #{tpu_custom_call.1} parent=27 // pred_check
          %p520 = pneg %p115
        $region46: #{tpu_custom_call.1} parent=27 // pred_check_branch
          %522 = sbr.rel (%p520) target = $region48
        $region47: #{tpu_custom_call.1} parent=27 // pred_region
          %s523 = smul.u32 8, %s25
          %s525 = ssub.s32 1024, 1024
          %526 = vsyncadd %s516, %s525
          %s527 = sadd.s32 %s26, %s523
          %s528 = smul.addr %s527, 128
          %s529 = scalar_lea.hbm %s2, %s528
          %s530 = sshll.u32 %s519, 4
          %s531 = int_to_ptr.vmem [resolvable:$true] %s530
          %536 = dma.vmem_to_hbm [thread:$0]  %s531, 1024, %s529, %s516, 128, 128, 8
        $region48: #{tpu_custom_call.1} parent=27 // pred_fallthru
          _
      $region28: #{tpu_custom_call.1} parent=5 // pred_fallthru
        _
      %p537 = scmp.le.s32.totalorder 2, %s15
      // Predicated region
      $region49: #{tpu_custom_call.1} parent=5 // pred_check
        %p538 = pneg %p537
      $region50: #{tpu_custom_call.1} parent=5 // pred_check_branch
        %540 = sbr.rel (%p538) target = $region52
      $region51: #{tpu_custom_call.1} parent=5 // pred_region
        %s541 = ssub.s32 %s15, 2
        // Predicated region
        $region53: #{tpu_custom_call.1} parent=51 // pred_check
          %p542 = pneg %p121
        $region54: #{tpu_custom_call.1} parent=51 // pred_check_branch
          %544 = sbr.rel (%p542) target = $region56
        $region55: #{tpu_custom_call.1} parent=51 // pred_region
          %s545 = sand.u32 %s106, 1
          %s546 = scalar_lea.sflag [#allocation5], %s545
          %s547 = sand.u32 %s106, 1
          %s548 = smul.addr %s547, 64
          %s549 = scalar_lea.vmem [#allocation8], %s548
          %550 = dma.done %s546, 1024
        $region56: #{tpu_custom_call.1} parent=51 // pred_fallthru
          _
      $region52: #{tpu_custom_call.1} parent=5 // pred_fallthru
        _
    $region6: #{tpu_custom_call.1} parent=1 // loop_footer
      %s19 = sadd.s32 1, %s15
    $region7: #{tpu_custom_call.1} parent=1 // loop_footer_branch
      %14 = sbr.rel target = $region3
    $region8: #{tpu_custom_call.1} parent=1 // loop_exit
      _
    %551 = vsyncpa [#allocation4], 1
    %s552 = scalar_lea.sflag [#allocation4], 1
    %553 = vsyncpa %s552, 1
    %554 = vsyncpa [#allocation7], 1
    %555 = vsyncpa [#allocation5], 1
    %s556 = scalar_lea.sflag [#allocation5], 1
    %557 = vsyncpa %s556, 1

</llo_original>
